<compile_context>
chip_gen: v6e
topology: v6e:2x2x1
jax: 0.10.0
libtpu: 0.0.40
codegen_flags: <defaults>
</compile_context>

<pallas_src>
import jax
import jax.numpy as jnp
from jax.experimental import pallas as pl
from jax.experimental.pallas import tpu as pltpu


# --------------------------------------------------------------------------
# Helpers
# --------------------------------------------------------------------------
def _round_up(x, m):
    return ((x + m - 1) // m) * m


def _vmem_capacity_bytes():
    """Generation-aware VMEM capacity (v5e/v6e: 128 MiB, v7x: 64 MiB)."""
    try:
        return int(pltpu.get_tpu_info().vmem_capacity_bytes)
    except Exception:
        return 64 * 1024 * 1024   # conservative fallback (v7x per-core VMEM)


# --------------------------------------------------------------------------
# Fused single-pass kernel: A_hat fully VMEM-resident, read from HBM once.
#   grid = (2, np_//tm): phase 0 computes zw rows, phase 1 aggregates heads.
# --------------------------------------------------------------------------
def _make_fused_kernel(tm):
    def kernel(a_ref, xw_ref, b1_ref, wh_ref, bh_ref, out_ref, zw_ref):
        p = pl.program_id(0)
        i = pl.program_id(1)
        row = pl.multiple_of(i * tm, tm)
        a_rows = a_ref[pl.ds(row, tm), :]                 # (tm, np_) bf16

        @pl.when(p == 0)
        def _():
            acc = jnp.dot(a_rows, xw_ref[...],
                          preferred_element_type=jnp.float32)
            z = jnp.maximum(acc + b1_ref[...], 0.0)
            # TODO(synk): dropout is identity in eval mode; training-mode
            # stochastic dropout would need pltpu.prng_* here.
            zw = jnp.dot(z.astype(wh_ref.dtype), wh_ref[...],
                         preferred_element_type=jnp.float32)
            zw_ref[pl.ds(row, tm), :] = zw.astype(zw_ref.dtype)

        @pl.when(p == 1)
        def _():
            acc = jnp.dot(a_rows, zw_ref[...],
                          preferred_element_type=jnp.float32)
            out_ref[...] = (acc + bh_ref[...]).astype(out_ref.dtype)

    return kernel


# --------------------------------------------------------------------------
# Tiled two-pass kernels (large graphs): big A tiles, resident skinny operand.
# --------------------------------------------------------------------------
def _make_z_heads_kernel(tk):
    """acc += A_tile @ XW[k*tk:(k+1)*tk]; on last k: zw = relu(acc+b1)@W_heads."""
    def kernel(a_ref, xw_ref, b1_ref, wh_ref, zw_ref, acc_ref):
        k = pl.program_id(1)

        @pl.when(k == 0)
        def _():
            acc_ref[...] = jnp.zeros_like(acc_ref)

        off = pl.multiple_of(k * tk, tk)
        acc_ref[...] += jnp.dot(a_ref[...], xw_ref[pl.ds(off, tk), :],
                                preferred_element_type=jnp.float32)

        @pl.when(k == pl.num_programs(1) - 1)
        def _():
            z = jnp.maximum(acc_ref[...] + b1_ref[...], 0.0)
            zw = jnp.dot(z.astype(wh_ref.dtype), wh_ref[...],
                         preferred_element_type=jnp.float32)
            zw_ref[...] = zw.astype(zw_ref.dtype)

    return kernel


def _make_aggregate_kernel(tk):
    """acc += A_tile @ zw[k*tk:(k+1)*tk]; on last k: out = acc + b_heads."""
    def kernel(a_ref, zw_ref, bh_ref, out_ref, acc_ref):
        k = pl.program_id(1)

        @pl.when(k == 0)
        def _():
            acc_ref[...] = jnp.zeros_like(acc_ref)

        off = pl.multiple_of(k * tk, tk)
        acc_ref[...] += jnp.dot(a_ref[...], zw_ref[pl.ds(off, tk), :],
                                preferred_element_type=jnp.float32)

        @pl.when(k == pl.num_programs(1) - 1)
        def _():
            out_ref[...] = (acc_ref[...] + bh_ref[...]).astype(out_ref.dtype)

    return kernel


# --------------------------------------------------------------------------
# Graph preprocessing (GCNConv caches this anyway via cached=True)
# --------------------------------------------------------------------------
def gcn_normalized_adjacency(edge_index, num_nodes, dtype=jnp.float32):
    """Dense A_hat = D^{-1/2}(A + I)D^{-1/2}; rows = destination nodes."""
    src, dst = edge_index[0], edge_index[1]
    adj = jnp.zeros((num_nodes, num_nodes), dtype=dtype)
    adj = adj.at[dst, src].add(1.0)
    diag = jnp.diagonal(adj)
    adj = adj + jnp.diag(jnp.where(diag > 0, 0.0, 1.0).astype(dtype))
    deg = jnp.sum(adj, axis=1)
    d_inv_sqrt = jnp.where(deg > 0, 1.0 / jnp.sqrt(deg), 0.0)
    return adj * d_inv_sqrt[:, None] * d_inv_sqrt[None, :]


# --------------------------------------------------------------------------
# Forward pass
# --------------------------------------------------------------------------
def encoder_forward(x, edge_index, params, *, force_tiled=False):
    """x: [N, input_dim] f32, edge_index: [2, E] int32 -> (mu, logvar)."""
    n = x.shape[0]
    f32, bf16 = jnp.float32, jnp.bfloat16

    hidden = params["w1"].shape[0]        # 2 * latent_dim
    latent = params["w_mu"].shape[0]

    hpad = _round_up(hidden, 128)         # keep at 128 lanes (lane-dense vst)
    lpad = _round_up(2 * latent, 128)

    a_hat = gcn_normalized_adjacency(edge_index, n, dtype=f32)

    # Tiny per-node projection hoisted out of the O(N^2) aggregation.
    xw = x @ params["w1"].T                              # [n, hidden] f32
    w_heads = jnp.concatenate([params["w_mu"].T, params["w_logvar"].T], axis=1)
    b_heads = jnp.concatenate([params["b_mu"], params["b_logvar"]])

    vmem_cap = _vmem_capacity_bytes()

    # --------------- path decision: fused (resident A) vs tiled ----------
    np_small = _round_up(n, 128)
    a_bytes = np_small * np_small * 2                    # bf16 A_hat
    skinny_bytes = np_small * max(hpad, lpad) * 2 * 4    # XW bufs + zw scratch
    use_fused = (not force_tiled) and (
        2 * a_bytes + skinny_bytes + (8 << 20) <= int(0.6 * vmem_cap))

    if use_fused:
        np_ = np_small
        if np_ % 512 == 0:
            tm = 512
        elif np_ % 256 == 0:
            tm = 256
        else:
            tm = 128
    else:
        # Pad to a multiple of 512 so tiles never degrade to 128-class sizes.
        np_ = _round_up(n, 512)
        tm = 512
        if np_ % 2048 == 0:
            tk = 2048
        elif np_ % 1024 == 0:
            tk = 1024
        else:
            tk = 512

    # --------------- padded operands (bf16 for the bandwidth-heavy ones) --
    a_p = jnp.zeros((np_, np_), bf16).at[:n, :n].set(a_hat.astype(bf16))
    xw_p = jnp.zeros((np_, hpad), bf16).at[:n, :hidden].set(xw.astype(bf16))
    b1_p = jnp.zeros((1, hpad), f32).at[0, :hidden].set(params["b1"])
    wh_p = jnp.zeros((hpad, lpad), bf16).at[:hidden, :2 * latent].set(
        w_heads.astype(bf16))
    bh_p = jnp.zeros((1, lpad), f32).at[0, :2 * latent].set(b_heads)

    if use_fused:
        # -------------------- fused single-pass --------------------------
        vmem_limit = min(int(0.85 * vmem_cap),
                         2 * a_bytes + skinny_bytes + (16 << 20))
        out = pl.pallas_call(
            _make_fused_kernel(tm),
            out_shape=jax.ShapeDtypeStruct((np_, lpad), f32),
            grid_spec=pltpu.PrefetchScalarGridSpec(
                num_scalar_prefetch=0,
                grid=(2, np_ // tm),
                in_specs=[
                    pl.BlockSpec((np_, np_), lambda p, i: (0, 0)),     # A (resident)
                    pl.BlockSpec((np_, hpad), lambda p, i: (0, 0)),    # XW (resident)
                    pl.BlockSpec((1, hpad), lambda p, i: (0, 0)),      # b1
                    pl.BlockSpec((hpad, lpad), lambda p, i: (0, 0)),   # W_heads
                    pl.BlockSpec((1, lpad), lambda p, i: (0, 0)),      # b_heads
                ],
                out_specs=pl.BlockSpec((tm, lpad), lambda p, i: (i, 0)),
                scratch_shapes=[pltpu.VMEM((np_, lpad), bf16)],        # zw
            ),
            # zw scratch is per-core, so the row axis must NOT be megacore-
            # sharded -> both axes "arbitrary" (fused path targets 1-TC chips).
            compiler_params=pltpu.CompilerParams(
                dimension_semantics=("arbitrary", "arbitrary"),
                vmem_limit_bytes=vmem_limit,
            ),
            cost_estimate=pl.CostEstimate(
                flops=2 * np_ * np_ * (hpad + lpad) + 2 * np_ * hpad * lpad,
                transcendentals=0,
                bytes_accessed=(2 * np_ * np_            # A, read once
                                + 2 * np_ * hpad         # XW
                                + 2 * hpad * lpad
                                + 4 * np_ * lpad),
            ),
        )(a_p, xw_p, b1_p, wh_p, bh_p)
    else:
        # -------------------- tiled two-pass ------------------------------
        grid = (np_ // tm, np_ // tk)
        cparams = pltpu.CompilerParams(
            dimension_semantics=("parallel", "arbitrary"),
            vmem_limit_bytes=min(int(0.75 * vmem_cap), 96 * 1024 * 1024),
        )

        # phase 1: zw = relu(A @ XW + b1) @ W_heads
        zw = pl.pallas_call(
            _make_z_heads_kernel(tk),
            out_shape=jax.ShapeDtypeStruct((np_, lpad), bf16),
            grid_spec=pltpu.PrefetchScalarGridSpec(
                num_scalar_prefetch=0,
                grid=grid,
                in_specs=[
                    pl.BlockSpec((tm, tk), lambda i, k: (i, k)),       # A tile
                    pl.BlockSpec((np_, hpad), lambda i, k: (0, 0)),    # XW (resident)
                    pl.BlockSpec((1, hpad), lambda i, k: (0, 0)),      # b1
                    pl.BlockSpec((hpad, lpad), lambda i, k: (0, 0)),   # W_heads
                ],
                out_specs=pl.BlockSpec((tm, lpad), lambda i, k: (i, 0)),
                scratch_shapes=[pltpu.VMEM((tm, hpad), jnp.float32)],
            ),
            compiler_params=cparams,
            cost_estimate=pl.CostEstimate(
                flops=2 * np_ * np_ * hpad + 2 * np_ * hpad * lpad,
                transcendentals=0,
                bytes_accessed=(2 * np_ * np_ + 2 * np_ * hpad
                                + 2 * hpad * lpad + 2 * np_ * lpad),
            ),
        )(a_p, xw_p, b1_p, wh_p)

        # phase 2: [mu | logvar] = A @ zw + [bmu | blv]
        out = pl.pallas_call(
            _make_aggregate_kernel(tk),
            out_shape=jax.ShapeDtypeStruct((np_, lpad), f32),
            grid_spec=pltpu.PrefetchScalarGridSpec(
                num_scalar_prefetch=0,
                grid=grid,
                in_specs=[
                    pl.BlockSpec((tm, tk), lambda i, k: (i, k)),       # A tile
                    pl.BlockSpec((np_, lpad), lambda i, k: (0, 0)),    # zw (resident)
                    pl.BlockSpec((1, lpad), lambda i, k: (0, 0)),      # b_heads
                ],
                out_specs=pl.BlockSpec((tm, lpad), lambda i, k: (i, 0)),
                scratch_shapes=[pltpu.VMEM((tm, lpad), jnp.float32)],
            ),
            compiler_params=cparams,
            cost_estimate=pl.CostEstimate(
                flops=2 * np_ * np_ * lpad,
                transcendentals=0,
                bytes_accessed=2 * np_ * np_ + 2 * np_ * lpad + 4 * np_ * lpad,
            ),
        )(a_p, zw, bh_p)

    mu = out[:n, :latent]
    logvar = out[:n, latent:2 * latent]
    return mu, logvar


# --------------------------------------------------------------------------
# Param init (matches the PyTorch module's init)
# --------------------------------------------------------------------------
def xavier_uniform(key, shape, dtype=jnp.float32):
    """Matches nn.init.xavier_uniform_ for a (fan_out, fan_in) weight."""
    fan_out, fan_in = shape
    bound = jnp.sqrt(6.0 / (fan_in + fan_out))
    return jax.random.uniform(key, shape, dtype, minval=-bound, maxval=bound)


def init_params(key, input_dim, latent_dim):
    k1, k2, k3 = jax.random.split(key, 3)
    hidden = latent_dim * 2
    return {
        # GCNConv.lin.weight has shape (out_channels, in_channels)
        "w1": xavier_uniform(k1, (hidden, input_dim)),
        "b1": jnp.zeros((hidden,), jnp.float32),      # GCNConv bias init = zeros
        "w_mu": xavier_uniform(k2, (latent_dim, hidden)),
        "b_mu": jnp.zeros((latent_dim,), jnp.float32),
        "w_logvar": xavier_uniform(k3, (latent_dim, hidden)),
        "b_logvar": jnp.zeros((latent_dim,), jnp.float32),
    }


if __name__ == "__main__":
    key = jax.random.PRNGKey(0)
    k_x, k_p = jax.random.split(key)

    num_nodes = 16
    input_dim = 16
    latent_dim = 8   # config['model']['latent_dim']; hidden = 16

    x = jax.random.normal(k_x, (num_nodes, input_dim), jnp.float32)
    # simple deterministic ring graph (both directions)
    src = jnp.arange(num_nodes, dtype=jnp.int32)
    dst = (src + 1) % num_nodes
    edge_index = jnp.concatenate(
        [jnp.stack([src, dst]), jnp.stack([dst, src])], axis=1)

    params = init_params(k_p, input_dim, latent_dim)

    # Pure-JAX reference (f32) — bf16 A/activations give small deviations.
    a_ref = gcn_normalized_adjacency(edge_index, num_nodes)
    z_ref = jax.nn.relu(a_ref @ (x @ params["w1"].T) + params["b1"])
    mu_ref = a_ref @ (z_ref @ params["w_mu"].T) + params["b_mu"]
    lv_ref = a_ref @ (z_ref @ params["w_logvar"].T) + params["b_logvar"]

    # Exercise both code paths: fused (A resident in VMEM) and tiled two-pass.
    for force_tiled in (False, True):
        mu, logvar = encoder_forward(x, edge_index, params,
                                     force_tiled=force_tiled)
        jax.block_until_ready((mu, logvar))

        assert mu.shape == (num_nodes, latent_dim)
        assert logvar.shape == (num_nodes, latent_dim)
        assert jnp.allclose(mu, mu_ref, atol=1e-1, rtol=1e-1)
        assert jnp.allclose(logvar, lv_ref, atol=1e-1, rtol=1e-1)
        assert bool(jnp.all(jnp.isfinite(mu)))
        assert bool(jnp.all(jnp.isfinite(logvar)))

    print("KERNEL_OK")
</pallas_src>

<mosaic_0001>
module attributes {stable_mosaic.version = 11 : i64} {
  func.func @kernel(%arg0: i32, %arg1: i32, %arg2: memref<128x128xbf16, #tpu.memory_space<vmem>>, %arg3: memref<128x128xbf16, #tpu.memory_space<vmem>>, %arg4: memref<1x128xf32, #tpu.memory_space<vmem>>, %arg5: memref<128x128xbf16, #tpu.memory_space<vmem>>, %arg6: memref<1x128xf32, #tpu.memory_space<vmem>>, %arg7: memref<128x128xf32, #tpu.memory_space<vmem>>, %arg8: memref<128x128xbf16, #tpu.memory_space<vmem>>) attributes {dimension_semantics = [#tpu.dimension_semantics<arbitrary>, #tpu.dimension_semantics<arbitrary>], iteration_bounds = array<i64: 2, 1>, scalar_prefetch = 0 : i64, scratch_operands = 1 : i64, tpu.core_type = #tpu.core_type<tc>, window_params = [{pipeline_mode = #tpu.pipeline_mode<synchronous>, transform_indices = @transform_0, window_bounds = array<i64: 128, 128>}, {pipeline_mode = #tpu.pipeline_mode<synchronous>, transform_indices = @transform_1, window_bounds = array<i64: 128, 128>}, {pipeline_mode = #tpu.pipeline_mode<synchronous>, transform_indices = @transform_2, window_bounds = array<i64: 1, 128>}, {pipeline_mode = #tpu.pipeline_mode<synchronous>, transform_indices = @transform_3, window_bounds = array<i64: 128, 128>}, {pipeline_mode = #tpu.pipeline_mode<synchronous>, transform_indices = @transform_4, window_bounds = array<i64: 1, 128>}, {transform_indices = @transform_5, window_bounds = array<i64: 128, 128>}]} {
    %c128_i32 = arith.constant 128 : i32
    %0 = arith.muli %arg1, %c128_i32 : i32
    %1 = tpu.assume_multiple %0, 128 : i32
    %2 = arith.index_cast %1 : i32 to index
    %c0 = arith.constant 0 : index
    %3 = vector.load %arg2[%2, %c0] : memref<128x128xbf16, #tpu.memory_space<vmem>>, vector<128x128xbf16>
    %c0_i32 = arith.constant 0 : i32
    %4 = arith.cmpi eq, %arg0, %c0_i32 : i32
    %5 = arith.extui %4 : i1 to i32
    %c0_i32_0 = arith.constant 0 : i32
    %6 = arith.cmpi ne, %5, %c0_i32_0 : i32
    scf.if %6 {
      %c0_2 = arith.constant 0 : index
      %c0_3 = arith.constant 0 : index
      %10 = vector.load %arg3[%c0_2, %c0_3] : memref<128x128xbf16, #tpu.memory_space<vmem>>, vector<128x128xbf16>
      %cst = arith.constant dense<0.000000e+00> : vector<128x128xf32>
      %11 = tpu.matmul %3, %10, %cst {dimension_numbers = #tpu.dot_dimension_numbers<[1], [0], [0], [1], [0, 0, 1, 1], [], []>} : vector<128x128xbf16>, vector<128x128xbf16>, vector<128x128xf32> -> vector<128x128xf32>
      %c0_4 = arith.constant 0 : index
      %c0_5 = arith.constant 0 : index
      %12 = vector.load %arg4[%c0_4, %c0_5] : memref<1x128xf32, #tpu.memory_space<vmem>>, vector<1x128xf32>
      %13 = vector.broadcast %12 : vector<1x128xf32> to vector<128x128xf32>
      %14 = arith.addf %11, %13 : vector<128x128xf32>
      %cst_6 = arith.constant 0.000000e+00 : f32
      %15 = vector.broadcast %cst_6 : f32 to vector<128x128xf32>
      %16 = arith.maximumf %14, %15 : vector<128x128xf32>
      %17 = arith.truncf %16 : vector<128x128xf32> to vector<128x128xbf16>
      %c0_7 = arith.constant 0 : index
      %c0_8 = arith.constant 0 : index
      %18 = vector.load %arg5[%c0_7, %c0_8] : memref<128x128xbf16, #tpu.memory_space<vmem>>, vector<128x128xbf16>
      %cst_9 = arith.constant dense<0.000000e+00> : vector<128x128xf32>
      %19 = tpu.matmul %17, %18, %cst_9 {dimension_numbers = #tpu.dot_dimension_numbers<[1], [0], [0], [1], [0, 0, 1, 1], [], []>} : vector<128x128xbf16>, vector<128x128xbf16>, vector<128x128xf32> -> vector<128x128xf32>
      %20 = arith.truncf %19 : vector<128x128xf32> to vector<128x128xbf16>
      %21 = arith.index_cast %1 : i32 to index
      %c0_10 = arith.constant 0 : index
      %22 = vector.load %arg8[%21, %c0_10] : memref<128x128xbf16, #tpu.memory_space<vmem>>, vector<128x128xbf16>
      tpu.vector_store %arg8[%21, %c0_10], %20 {strides = array<i32>} : memref<128x128xbf16, #tpu.memory_space<vmem>>, vector<128x128xbf16>,
    } else {
    }
    %c1_i32 = arith.constant 1 : i32
    %7 = arith.cmpi eq, %arg0, %c1_i32 : i32
    %8 = arith.extui %7 : i1 to i32
    %c0_i32_1 = arith.constant 0 : i32
    %9 = arith.cmpi ne, %8, %c0_i32_1 : i32
    scf.if %9 {
      %c0_2 = arith.constant 0 : index
      %c0_3 = arith.constant 0 : index
      %10 = vector.load %arg8[%c0_2, %c0_3] : memref<128x128xbf16, #tpu.memory_space<vmem>>, vector<128x128xbf16>
      %cst = arith.constant dense<0.000000e+00> : vector<128x128xf32>
      %11 = tpu.matmul %3, %10, %cst {dimension_numbers = #tpu.dot_dimension_numbers<[1], [0], [0], [1], [0, 0, 1, 1], [], []>} : vector<128x128xbf16>, vector<128x128xbf16>, vector<128x128xf32> -> vector<128x128xf32>
      %c0_4 = arith.constant 0 : index
      %c0_5 = arith.constant 0 : index
      %12 = vector.load %arg6[%c0_4, %c0_5] : memref<1x128xf32, #tpu.memory_space<vmem>>, vector<1x128xf32>
      %13 = vector.broadcast %12 : vector<1x128xf32> to vector<128x128xf32>
      %14 = arith.addf %11, %13 : vector<128x128xf32>
      %c0_6 = arith.constant 0 : index
      %c0_7 = arith.constant 0 : index
      %15 = vector.load %arg7[%c0_6, %c0_7] : memref<128x128xf32, #tpu.memory_space<vmem>>, vector<128x128xf32>
      tpu.vector_store %arg7[%c0_6, %c0_7], %14 {strides = array<i32>} : memref<128x128xf32, #tpu.memory_space<vmem>>, vector<128x128xf32>,
    } else {
    }
    return
  }
  func.func @transform_0(%arg0: i32, %arg1: i32) -> (i32, i32) {
    %c0_i32 = arith.constant 0 : i32
    %c0_i32_0 = arith.constant 0 : i32
    %c0_i32_1 = arith.constant 0 : i32
    return %c0_i32, %c0_i32_0 : i32, i32
  }
  func.func @transform_1(%arg0: i32, %arg1: i32) -> (i32, i32) {
    %c0_i32 = arith.constant 0 : i32
    %c0_i32_0 = arith.constant 0 : i32
    %c0_i32_1 = arith.constant 0 : i32
    return %c0_i32, %c0_i32_0 : i32, i32
  }
  func.func @transform_2(%arg0: i32, %arg1: i32) -> (i32, i32) {
    %c0_i32 = arith.constant 0 : i32
    %c0_i32_0 = arith.constant 0 : i32
    %c0_i32_1 = arith.constant 0 : i32
    return %c0_i32, %c0_i32_0 : i32, i32
  }
  func.func @transform_3(%arg0: i32, %arg1: i32) -> (i32, i32) {
    %c0_i32 = arith.constant 0 : i32
    %c0_i32_0 = arith.constant 0 : i32
    %c0_i32_1 = arith.constant 0 : i32
    return %c0_i32, %c0_i32_0 : i32, i32
  }
  func.func @transform_4(%arg0: i32, %arg1: i32) -> (i32, i32) {
    %c0_i32 = arith.constant 0 : i32
    %c0_i32_0 = arith.constant 0 : i32
    %c0_i32_1 = arith.constant 0 : i32
    return %c0_i32, %c0_i32_0 : i32, i32
  }
  func.func @transform_5(%arg0: i32, %arg1: i32) -> (i32, i32) {
    %c0_i32 = arith.constant 0 : i32
    %c0_i32_0 = arith.constant 0 : i32
    return %arg1, %c0_i32 : i32, i32
  }
}

</mosaic_0001>

<llo_original>
// kernel: tpu_custom_call.1
$region0: #{tpu_custom_call.1}
  #allocation0 [shape = 'u32[]', space=smem, size = 0x4, offset = 0x4, fixed_abs, tag = 'smem constant byte address 0x4 - core index']
  #allocation1 [shape = 'u32[144,128]{1,0:T(1,128)}', space=vmem, size = 0x12000, scoped, tag = 'internal scratch']
  #allocation2 [shape = 'bf16[128,128]{1,0:T(8,128)(2,1)}', space=vmem, size = 0x8000, scoped, tag = 'scratch operand']
  %s0 = inlined_call_operand.hbm [shape: bf16[128,128], index: 0, kind: input, shape index: {}]
  %s1 = inlined_call_operand.hbm [shape: bf16[128,128], index: 1, kind: input, shape index: {}]
  %s2 = inlined_call_operand.vmem [shape: f32[1,128], index: 2, kind: input, shape index: {}]
  %s3 = inlined_call_operand.hbm [shape: bf16[128,128], index: 3, kind: input, shape index: {}]
  %s4 = inlined_call_operand.vmem [shape: f32[1,128], index: 4, kind: input, shape index: {}]
  %s5 = inlined_call_operand.hbm [shape: f32[128,128], index: 5, kind: output, shape index: {}]
  %s6 = sld [smem:[#allocation0]]
  $region73: #{tpu_custom_call.1} parent=0
    _
  %s8 = ssub.s32 1, %s6
  %s9 = scalar_select 0, %s8, %s6
  $region1: #{tpu_custom_call.1} parent=0
    #allocation3 [shape = 'u8[32768]{0}', space=vmem, size = 0x8000, scoped, tag = 'input window, operand 0, single buffered']
    #allocation4 [shape = 's32[2]{0}', space=sflag, size = 0x8, scoped, tag = 'scoped memory for tpu_custom_call.1']
    #allocation5 [shape = 's32[2]{0}', space=sflag, size = 0x8, scoped, tag = 'scoped memory for tpu_custom_call.1']
    #allocation6 [shape = 'u8[32768]{0}', space=vmem, size = 0x8000, scoped, tag = 'input window, operand 1, single buffered']
    #allocation7 [shape = 's32[1]{0}', space=sflag, size = 0x4, scoped, tag = 'scoped memory for tpu_custom_call.1']
    #allocation8 [shape = 'u8[32768]{0}', space=vmem, size = 0x8000, scoped, tag = 'input window, operand 3, single buffered']
    #allocation9 [shape = 'u8[65536]{0}', space=vmem, size = 0x10000, scoped, tag = 'output window, operand 0, single buffered']
    %10 = vsyncpa [#allocation4], 0
    %11 = vsyncpa [#allocation7], 0
    %12 = vsyncpa [#allocation5], 0
    loop: start=0, step=1, limit=4
    $region2: #{tpu_custom_call.1} parent=1 // loop_pre_header
      _
    $region3: #{tpu_custom_call.1} parent=1 // loop_header
      %s14 = sphi 0, %s18
      %p15 = scmp.ge.s32.totalorder %s14, 4
      %s21 = sphi 0, %s33
      %s22 = sphi 0, %s29
      %s23 = sphi 0, %s21
      %s24 = sphi 0, %s22
      %s25 = sphi 0, %s23
      %s26 = sphi 0, %s24
      %s34 = sphi 0, %s34
      %s36 = sphi 0, %s34
      %s37 = sphi 0, %s36
      %s51 = sphi 0, %s37
      %s55 = sphi 0, %s55
      %s57 = sphi 0, %s55
      %s58 = sphi 0, %s57
      %s72 = sphi 0, %s58
      %s76 = sphi 0, %s76
      %s78 = sphi 0, %s76
      %s79 = sphi 0, %s78
      %s93 = sphi 0, %s79
      %s97 = sphi 0, %s97
      %s99 = sphi 0, %s97
      %s100 = sphi 0, %s99
      %s114 = sphi 0, %s100
      %s118 = sphi 0, %s118
      %s120 = sphi 0, %s118
      %s121 = sphi 0, %s120
      %s135 = sphi 0, %s121
      %s141 = sphi 0, %s143
      %s144 = sphi 0, %s141
      %s145 = sphi 0, %s144
      %s161 = sphi 0, %s145
    $region4: #{tpu_custom_call.1} parent=1 // loop_header_branch
      %17 = sbr.rel (%p15) target = $region8
    $region5: #{tpu_custom_call.1} parent=1 // loop_body
      %s19 = ssub.s32 %s14, 1
      %s20 = ssub.s32 %s14, 2
      %s27 = sadd.s32 1, %s22
      %p28 = scmp.ge.s32.totalorder %s27, 1
      %s29 = scalar_select %p28, 0, %s27
      %s30 = sadd.s32 1, %s21
      %s31 = scalar_select %p28, %s30, %s21
      %p32 = scmp.ge.s32.totalorder %s31, 2
      %s33 = scalar_select %p32, 0, %s31
      %s35 = sadd.s32 %s34, 1
      %p38 = scmp.eq.s32.totalorder %s14, 1
      %p39 = scmp.ne.s32.totalorder %s34, %s36
      %p40 = scmp.eq.s32.totalorder %s14, 0
      %p41 = por %p39, %p40
      %p42 = scmp.ne.s32.totalorder %s34, %s36
      %p43 = scmp.eq.s32.totalorder %s19, 1
      %p44 = por %p42, %p43
      %p45 = scmp.ne.s32.totalorder %s36, %s37
      %p46 = scmp.eq.s32.totalorder %s19, 0
      %p47 = por %p45, %p46
      %p48 = scmp.ne.s32.totalorder %s36, %s37
      %p49 = scmp.eq.s32.totalorder %s20, 1
      %p50 = por %p48, %p49
      %p52 = scmp.ne.s32.totalorder %s37, %s51
      %p53 = scmp.eq.s32.totalorder %s20, 0
      %p54 = por %p52, %p53
      %s56 = sadd.s32 %s55, 1
      %p59 = scmp.eq.s32.totalorder %s14, 1
      %p60 = scmp.ne.s32.totalorder %s55, %s57
      %p61 = scmp.eq.s32.totalorder %s14, 0
      %p62 = por %p60, %p61
      %p63 = scmp.ne.s32.totalorder %s55, %s57
      %p64 = scmp.eq.s32.totalorder %s19, 1
      %p65 = por %p63, %p64
      %p66 = scmp.ne.s32.totalorder %s57, %s58
      %p67 = scmp.eq.s32.totalorder %s19, 0
      %p68 = por %p66, %p67
      %p69 = scmp.ne.s32.totalorder %s57, %s58
      %p70 = scmp.eq.s32.totalorder %s20, 1
      %p71 = por %p69, %p70
      %p73 = scmp.ne.s32.totalorder %s58, %s72
      %p74 = scmp.eq.s32.totalorder %s20, 0
      %p75 = por %p73, %p74
      %s77 = sadd.s32 %s76, 1
      %p80 = scmp.eq.s32.totalorder %s14, 1
      %p81 = scmp.ne.s32.totalorder %s76, %s78
      %p82 = scmp.eq.s32.totalorder %s14, 0
      %p83 = por %p81, %p82
      %p84 = scmp.ne.s32.totalorder %s76, %s78
      %p85 = scmp.eq.s32.totalorder %s19, 1
      %p86 = por %p84, %p85
      %p87 = scmp.ne.s32.totalorder %s78, %s79
      %p88 = scmp.eq.s32.totalorder %s19, 0
      %p89 = por %p87, %p88
      %p90 = scmp.ne.s32.totalorder %s78, %s79
      %p91 = scmp.eq.s32.totalorder %s20, 1
      %p92 = por %p90, %p91
      %p94 = scmp.ne.s32.totalorder %s79, %s93
      %p95 = scmp.eq.s32.totalorder %s20, 0
      %p96 = por %p94, %p95
      %s98 = sadd.s32 %s97, 1
      %p101 = scmp.eq.s32.totalorder %s14, 1
      %p102 = scmp.ne.s32.totalorder %s97, %s99
      %p103 = scmp.eq.s32.totalorder %s14, 0
      %p104 = por %p102, %p103
      %p105 = scmp.ne.s32.totalorder %s97, %s99
      %p106 = scmp.eq.s32.totalorder %s19, 1
      %p107 = por %p105, %p106
      %p108 = scmp.ne.s32.totalorder %s99, %s100
      %p109 = scmp.eq.s32.totalorder %s19, 0
      %p110 = por %p108, %p109
      %p111 = scmp.ne.s32.totalorder %s99, %s100
      %p112 = scmp.eq.s32.totalorder %s20, 1
      %p113 = por %p111, %p112
      %p115 = scmp.ne.s32.totalorder %s100, %s114
      %p116 = scmp.eq.s32.totalorder %s20, 0
      %p117 = por %p115, %p116
      %s119 = sadd.s32 %s118, 1
      %p122 = scmp.eq.s32.totalorder %s14, 1
      %p123 = scmp.ne.s32.totalorder %s118, %s120
      %p124 = scmp.eq.s32.totalorder %s14, 0
      %p125 = por %p123, %p124
      %p126 = scmp.ne.s32.totalorder %s118, %s120
      %p127 = scmp.eq.s32.totalorder %s19, 1
      %p128 = por %p126, %p127
      %p129 = scmp.ne.s32.totalorder %s120, %s121
      %p130 = scmp.eq.s32.totalorder %s19, 0
      %p131 = por %p129, %p130
      %p132 = scmp.ne.s32.totalorder %s120, %s121
      %p133 = scmp.eq.s32.totalorder %s20, 1
      %p134 = por %p132, %p133
      %p136 = scmp.ne.s32.totalorder %s121, %s135
      %p137 = scmp.eq.s32.totalorder %s20, 0
      %p138 = por %p136, %p137
      %s139 = ssub.s32 %s22, %s29
      %p140 = scmp.eq.s32.totalorder %s139, 0
      %s142 = sadd.s32 %s141, 1
      %s143 = scalar_select %p140, %s141, %s142
      %p146 = pneg %p140
      %p147 = scmp.eq.s32.totalorder %s14, 1
      %p148 = por %p146, %p147
      %p149 = scmp.ne.s32.totalorder %s141, %s144
      %p150 = scmp.eq.s32.totalorder %s14, 0
      %p151 = por %p149, %p150
      %p152 = scmp.ne.s32.totalorder %s141, %s144
      %p153 = scmp.eq.s32.totalorder %s19, 1
      %p154 = por %p152, %p153
      %p155 = scmp.ne.s32.totalorder %s144, %s145
      %p156 = scmp.eq.s32.totalorder %s19, 0
      %p157 = por %p155, %p156
      %p158 = scmp.ne.s32.totalorder %s144, %s145
      %p159 = scmp.eq.s32.totalorder %s20, 1
      %p160 = por %p158, %p159
      %p162 = scmp.ne.s32.totalorder %s145, %s161
      %p163 = scmp.eq.s32.totalorder %s20, 0
      %p164 = por %p162, %p163
      %p165 = scmp.le.s32.totalorder 1, %s14
      %p166 = scmp.lt.s32.totalorder %s14, 3
      %p167 = pnand %p165, %p166
      %p168 = pneg %p167
      // Predicated region
      $region9: #{tpu_custom_call.1} parent=5 // pred_check
        _
      $region10: #{tpu_custom_call.1} parent=5 // pred_check_branch
        %170 = sbr.rel (%p167) target = $region12
      $region11: #{tpu_custom_call.1} parent=5 // pred_region
        %s171 = ssub.s32 %s14, 1
        // Predicated region
        $region13: #{tpu_custom_call.1} parent=11 // pred_check
          %p172 = pneg %p47
        $region14: #{tpu_custom_call.1} parent=11 // pred_check_branch
          %174 = sbr.rel (%p172) target = $region16
        $region15: #{tpu_custom_call.1} parent=11 // pred_region
          %s176 = ssub.s32 1024, 1024
          %177 = vsyncadd [#allocation4], %s176
          %s178 = sshll.u32 [#allocation3], 4
          %s179 = int_to_ptr.vmem [resolvable:$true] %s178
          %184 = dma.hbm_to_vmem [thread:$0]  %s0, 1024, %s179, [#allocation4], 64, 64, 4
        $region16: #{tpu_custom_call.1} parent=11 // pred_fallthru
          _
        // Predicated region
        $region17: #{tpu_custom_call.1} parent=11 // pred_check
          %p185 = pneg %p68
        $region18: #{tpu_custom_call.1} parent=11 // pred_check_branch
          %187 = sbr.rel (%p185) target = $region20
        $region19: #{tpu_custom_call.1} parent=11 // pred_region
          %s189 = ssub.s32 1024, 1024
          %190 = vsyncadd [#allocation7], %s189
          %s191 = sshll.u32 [#allocation6], 4
          %s192 = int_to_ptr.vmem [resolvable:$true] %s191
          %197 = dma.hbm_to_vmem [thread:$0]  %s1, 1024, %s192, [#allocation7], 64, 64, 4
        $region20: #{tpu_custom_call.1} parent=11 // pred_fallthru
          _
        // Predicated region
        $region21: #{tpu_custom_call.1} parent=11 // pred_check
          %p198 = pneg %p89
        $region22: #{tpu_custom_call.1} parent=11 // pred_check_branch
          %200 = sbr.rel (%p198) target = $region24
        $region23: #{tpu_custom_call.1} parent=11 // pred_region
          _
        $region24: #{tpu_custom_call.1} parent=11 // pred_fallthru
          _
        // Predicated region
        $region25: #{tpu_custom_call.1} parent=11 // pred_check
          %p201 = pneg %p110
        $region26: #{tpu_custom_call.1} parent=11 // pred_check_branch
          %203 = sbr.rel (%p201) target = $region28
        $region27: #{tpu_custom_call.1} parent=11 // pred_region
          %s205 = ssub.s32 1024, 1024
          %206 = vsyncadd [#allocation7], %s205
          %s207 = sshll.u32 [#allocation8], 4
          %s208 = int_to_ptr.vmem [resolvable:$true] %s207
          %213 = dma.hbm_to_vmem [thread:$0]  %s3, 1024, %s208, [#allocation7], 64, 64, 4
        $region28: #{tpu_custom_call.1} parent=11 // pred_fallthru
          _
        // Predicated region
        $region29: #{tpu_custom_call.1} parent=11 // pred_check
          %p214 = pneg %p131
        $region30: #{tpu_custom_call.1} parent=11 // pred_check_branch
          %216 = sbr.rel (%p214) target = $region32
        $region31: #{tpu_custom_call.1} parent=11 // pred_region
          _
        $region32: #{tpu_custom_call.1} parent=11 // pred_fallthru
          _
      $region12: #{tpu_custom_call.1} parent=5 // pred_fallthru
        _
      %p217 = scmp.lt.s32.totalorder %s14, 2
      // Predicated region
      $region33: #{tpu_custom_call.1} parent=5 // pred_check
        %p218 = pneg %p217
      $region34: #{tpu_custom_call.1} parent=5 // pred_check_branch
        %220 = sbr.rel (%p218) target = $region36
      $region35: #{tpu_custom_call.1} parent=5 // pred_region
        _
      $region36: #{tpu_custom_call.1} parent=5 // pred_fallthru
        _
      %p221 = scmp.le.s32.totalorder 1, %s14
      %p222 = scmp.lt.s32.totalorder %s14, 3
      %p223 = pnand %p221, %p222
      %p224 = pneg %p223
      // Predicated region
      $region37: #{tpu_custom_call.1} parent=5 // pred_check
        _
      $region38: #{tpu_custom_call.1} parent=5 // pred_check_branch
        %226 = sbr.rel (%p223) target = $region40
      $region39: #{tpu_custom_call.1} parent=5 // pred_region
        %s227 = ssub.s32 %s14, 1
        // Predicated region
        $region41: #{tpu_custom_call.1} parent=39 // pred_check
          %p228 = pneg %p47
        $region42: #{tpu_custom_call.1} parent=39 // pred_check_branch
          %230 = sbr.rel (%p228) target = $region44
        $region43: #{tpu_custom_call.1} parent=39 // pred_region
          %231 = dma.done [#allocation4], 1024
        $region44: #{tpu_custom_call.1} parent=39 // pred_fallthru
          _
        // Predicated region
        $region45: #{tpu_custom_call.1} parent=39 // pred_check
          %p232 = pneg %p68
        $region46: #{tpu_custom_call.1} parent=39 // pred_check_branch
          %234 = sbr.rel (%p232) target = $region48
        $region47: #{tpu_custom_call.1} parent=39 // pred_region
          %235 = dma.done [#allocation7], 1024
        $region48: #{tpu_custom_call.1} parent=39 // pred_fallthru
          _
        // Predicated region
        $region49: #{tpu_custom_call.1} parent=39 // pred_check
          %p236 = pneg %p110
        $region50: #{tpu_custom_call.1} parent=39 // pred_check_branch
          %238 = sbr.rel (%p236) target = $region52
        $region51: #{tpu_custom_call.1} parent=39 // pred_region
          %239 = dma.done [#allocation7], 1024
        $region52: #{tpu_custom_call.1} parent=39 // pred_fallthru
          _
        %p240 = pneg %p47
        %p241 = pneg %p44
        %p242 = pneg %p68
        %p243 = pneg %p65
        %p244 = pneg %p89
        %p245 = pneg %p86
        %p246 = pneg %p110
        %p247 = pneg %p107
        %p248 = pneg %p131
        %p249 = pneg %p128
        %p250 = pneg %p157
        %p251 = pneg %p154
        %s252 = smul.u32 16, %s24
        %s254 = smul.u32 %s24, 128
        %s255 = sshra.s32 %s254, 3
        %s256 = sand.u32 %s254, 7
        %s257 = smul.addr %s255, 4
        %s258 = scalar_lea.vmem [#allocation3], %s257
        %v259 = vld [vmem:[%s258] sm:$0xf]
        %v260 = vld [vmem:[%s258 + $0x4] sm:$0xf]
        %v261 = vld [vmem:[%s258 + $0x8] sm:$0xf]
        %v262 = vld [vmem:[%s258 + $0xc] sm:$0xf]
        %v263 = vld [vmem:[%s258 + $0x10] sm:$0xf]
        %v264 = vld [vmem:[%s258 + $0x14] sm:$0xf]
        %v265 = vld [vmem:[%s258 + $0x18] sm:$0xf]
        %v266 = vld [vmem:[%s258 + $0x1c] sm:$0xf]
        %v267 = vld [vmem:[%s258 + $0x20] sm:$0xf]
        %v268 = vld [vmem:[%s258 + $0x24] sm:$0xf]
        %v269 = vld [vmem:[%s258 + $0x28] sm:$0xf]
        %v270 = vld [vmem:[%s258 + $0x2c] sm:$0xf]
        %v271 = vld [vmem:[%s258 + $0x30] sm:$0xf]
        %v272 = vld [vmem:[%s258 + $0x34] sm:$0xf]
        %v273 = vld [vmem:[%s258 + $0x38] sm:$0xf]
        %v274 = vld [vmem:[%s258 + $0x3c] sm:$0xf]
        %p275 = scmp.eq.s32.totalorder %s23, 0
        // Predicated region
        $region53: #{tpu_custom_call.1} parent=39 // pred_check
          %p276 = pneg %p275
        $region54: #{tpu_custom_call.1} parent=39 // pred_check_branch
          %278 = sbr.rel (%p276) target = $region56
        $region55: #{tpu_custom_call.1} parent=39 // pred_region
          %v279 = vld [vmem:[#allocation6] sm:$0xf]
          %v280 = vld [vmem:[#allocation6 + $0x4] sm:$0xf]
          %v281 = vld [vmem:[#allocation6 + $0x8] sm:$0xf]
          %v282 = vld [vmem:[#allocation6 + $0xc] sm:$0xf]
          %v283 = vld [vmem:[#allocation6 + $0x10] sm:$0xf]
          %v284 = vld [vmem:[#allocation6 + $0x14] sm:$0xf]
          %v285 = vld [vmem:[#allocation6 + $0x18] sm:$0xf]
          %v286 = vld [vmem:[#allocation6 + $0x1c] sm:$0xf]
          %v287 = vld [vmem:[#allocation6 + $0x20] sm:$0xf]
          %v288 = vld [vmem:[#allocation6 + $0x24] sm:$0xf]
          %v289 = vld [vmem:[#allocation6 + $0x28] sm:$0xf]
          %v290 = vld [vmem:[#allocation6 + $0x2c] sm:$0xf]
          %v291 = vld [vmem:[#allocation6 + $0x30] sm:$0xf]
          %v292 = vld [vmem:[#allocation6 + $0x34] sm:$0xf]
          %v293 = vld [vmem:[#allocation6 + $0x38] sm:$0xf]
          %v294 = vld [vmem:[#allocation6 + $0x3c] sm:$0xf]
          %v295 = vld [vmem:[%s2] sm:$0x1]
          %v297 = vlaneseq
          %v298 = vshrl.u32 %v297, 7
          %v299 = vsub.s32 0, %v298
          %v300 = vrot.slane %v295, %v299
          %v318 = vunpack.c.l.b16 %v259
          %v319 = vunpack.c.l.b16 %v260
          %v320 = vunpack.c.l.b16 %v261
          %v321 = vunpack.c.l.b16 %v262
          %v322 = vunpack.c.l.b16 %v263
          %v323 = vunpack.c.l.b16 %v264
          %v324 = vunpack.c.l.b16 %v265
          %v325 = vunpack.c.l.b16 %v266
          %v326 = vunpack.c.l.b16 %v267
          %v327 = vunpack.c.l.b16 %v268
          %v328 = vunpack.c.l.b16 %v269
          %v329 = vunpack.c.l.b16 %v270
          %v330 = vunpack.c.l.b16 %v271
          %v331 = vunpack.c.l.b16 %v272
          %v332 = vunpack.c.l.b16 %v273
          %v333 = vunpack.c.l.b16 %v274
          %v334 = vpack.c.b16 %v319, %v318
          %v335 = vpack.c.b16 %v321, %v320
          %v336 = vpack.c.b16 %v323, %v322
          %v337 = vpack.c.b16 %v325, %v324
          %v338 = vpack.c.b16 %v327, %v326
          %v339 = vpack.c.b16 %v329, %v328
          %v340 = vpack.c.b16 %v331, %v330
          %v341 = vpack.c.b16 %v333, %v332
          %v366 = vunpack.c.l.b16 %v279
          %v367 = vunpack.c.l.b16 %v280
          %v368 = vunpack.c.l.b16 %v281
          %v369 = vunpack.c.l.b16 %v282
          %v370 = vunpack.c.l.b16 %v283
          %v371 = vunpack.c.l.b16 %v284
          %v372 = vunpack.c.l.b16 %v285
          %v373 = vunpack.c.l.b16 %v286
          %v374 = vunpack.c.l.b16 %v287
          %v375 = vunpack.c.l.b16 %v288
          %v376 = vunpack.c.l.b16 %v289
          %v377 = vunpack.c.l.b16 %v290
          %v378 = vunpack.c.l.b16 %v291
          %v379 = vunpack.c.l.b16 %v292
          %v380 = vunpack.c.l.b16 %v293
          %v381 = vunpack.c.l.b16 %v294
          %v382 = vpack.c.b16 %v367, %v366
          %v383 = vpack.c.b16 %v369, %v368
          %v384 = vpack.c.b16 %v371, %v370
          %v385 = vpack.c.b16 %v373, %v372
          %v386 = vpack.c.b16 %v375, %v374
          %v387 = vpack.c.b16 %v377, %v376
          %v388 = vpack.c.b16 %v379, %v378
          %v389 = vpack.c.b16 %v381, %v380
          %398 = vmatprep.subr.bf16.mxu0 0
          %399 = vmatpush1.bf16.msra.mxu0 %v389
          %400 = vmatprep.subr.bf16.mxu0 0
          %401 = vmatpush1.bf16.msra.mxu0 %v388
          %402 = vmatprep.subr.bf16.mxu0 0
          %403 = vmatpush1.bf16.msra.mxu0 %v387
          %404 = vmatprep.subr.bf16.mxu0 0
          %405 = vmatpush1.bf16.msra.mxu0 %v386
          %406 = vmatprep.subr.bf16.mxu0 0
          %407 = vmatpush1.bf16.msra.mxu0 %v385
          %408 = vmatprep.subr.bf16.mxu0 0
          %409 = vmatpush1.bf16.msra.mxu0 %v384
          %410 = vmatprep.subr.bf16.mxu0 0
          %411 = vmatpush1.bf16.msra.mxu0 %v383
          %412 = vmatprep.subr.bf16.mxu0 0
          %413 = vmatpush1.bf16.msra.mxu0 %v382
          %414 = vmatprep.subr.bf16.mxu0 0
          %415 = vmatpush2.bf16.msra.mxu0 0
          %416 = vmatprep.subr.bf16.mxu0 0
          %417 = vmatpush2.bf16.msra.mxu0 0
          %418 = vmatprep.subr.bf16.mxu0 0
          %419 = vmatpush2.bf16.msra.mxu0 0
          %420 = vmatprep.subr.bf16.mxu0 0
          %421 = vmatpush2.bf16.msra.mxu0 0
          %422 = vmatprep.subr.bf16.mxu0 0
          %423 = vmatpush2.bf16.msra.mxu0 0
          %424 = vmatprep.subr.bf16.mxu0 0
          %425 = vmatpush2.bf16.msra.mxu0 0
          %426 = vmatprep.subr.bf16.mxu0 0
          %427 = vmatpush2.bf16.msra.mxu0 0
          %428 = vmatprep.subr.bf16.mxu0 0
          %429 = vmatpush2.bf16.msra.mxu0 0
          %430 = vmatprep.mubr.bf16.mxu0 0
          %431 = vmatmul.mubr.bf16.gmra.mxu0 %v334
          %v432 = vpop.f32.mrf.mxu0
          %v433 = vadd.f32 %v300, %v432
          %v434 = vpop.f32.mrf.mxu0
          %v435 = vpop.f32.mrf.mxu0
          %v436 = vadd.f32 %v300, %v435
          %v437 = vpop.f32.mrf.mxu0
          %438 = vmatprep.mubr.bf16.mxu0 0
          %439 = vmatmul.mubr.bf16.gmra.mxu0 %v335
          %v440 = vpop.f32.mrf.mxu0
          %v441 = vadd.f32 %v300, %v440
          %v442 = vpop.f32.mrf.mxu0
          %v443 = vpop.f32.mrf.mxu0
          %v444 = vadd.f32 %v300, %v443
          %v445 = vpop.f32.mrf.mxu0
          %446 = vmatprep.mubr.bf16.mxu0 0
          %447 = vmatmul.mubr.bf16.gmra.mxu0 %v336
          %v448 = vpop.f32.mrf.mxu0
          %v449 = vadd.f32 %v300, %v448
          %v450 = vpop.f32.mrf.mxu0
          %v451 = vpop.f32.mrf.mxu0
          %v452 = vadd.f32 %v300, %v451
          %v453 = vpop.f32.mrf.mxu0
          %454 = vmatprep.mubr.bf16.mxu0 0
          %455 = vmatmul.mubr.bf16.gmra.mxu0 %v337
          %v456 = vpop.f32.mrf.mxu0
          %v457 = vadd.f32 %v300, %v456
          %v458 = vpop.f32.mrf.mxu0
          %v459 = vpop.f32.mrf.mxu0
          %v460 = vadd.f32 %v300, %v459
          %v461 = vpop.f32.mrf.mxu0
          %462 = vmatprep.mubr.bf16.mxu0 0
          %463 = vmatmul.mubr.bf16.gmra.mxu0 %v338
          %v464 = vpop.f32.mrf.mxu0
          %v465 = vadd.f32 %v300, %v464
          %v466 = vpop.f32.mrf.mxu0
          %v467 = vpop.f32.mrf.mxu0
          %v468 = vadd.f32 %v300, %v467
          %v469 = vpop.f32.mrf.mxu0
          %470 = vmatprep.mubr.bf16.mxu0 0
          %471 = vmatmul.mubr.bf16.gmra.mxu0 %v339
          %v472 = vpop.f32.mrf.mxu0
          %v473 = vadd.f32 %v300, %v472
          %v474 = vpop.f32.mrf.mxu0
          %v475 = vpop.f32.mrf.mxu0
          %v476 = vadd.f32 %v300, %v475
          %v477 = vpop.f32.mrf.mxu0
          %478 = vmatprep.mubr.bf16.mxu0 0
          %479 = vmatmul.mubr.bf16.gmra.mxu0 %v340
          %v480 = vpop.f32.mrf.mxu0
          %v481 = vadd.f32 %v300, %v480
          %v482 = vpop.f32.mrf.mxu0
          %v483 = vpop.f32.mrf.mxu0
          %v484 = vadd.f32 %v300, %v483
          %v485 = vpop.f32.mrf.mxu0
          %486 = vmatprep.mubr.bf16.mxu0 0
          %487 = vmatmul.mubr.bf16.gmra.mxu0 %v341
          %v488 = vpop.f32.mrf.mxu0
          %v489 = vadd.f32 %v300, %v488
          %v490 = vpop.f32.mrf.mxu0
          %v491 = vpop.f32.mrf.mxu0
          %v492 = vadd.f32 %v300, %v491
          %v493 = vpop.f32.mrf.mxu0
          %494 = vdwg.mxu0
          %v495 = vmax.f32 %v433, 0.0
          %v496 = vmax.f32 %v436, 0.0
          %v497 = vmax.f32 %v441, 0.0
          %v498 = vmax.f32 %v444, 0.0
          %v499 = vmax.f32 %v449, 0.0
          %v500 = vmax.f32 %v452, 0.0
          %v501 = vmax.f32 %v457, 0.0
          %v502 = vmax.f32 %v460, 0.0
          %v503 = vmax.f32 %v465, 0.0
          %v504 = vmax.f32 %v468, 0.0
          %v505 = vmax.f32 %v473, 0.0
          %v506 = vmax.f32 %v476, 0.0
          %v507 = vmax.f32 %v481, 0.0
          %v508 = vmax.f32 %v484, 0.0
          %v509 = vmax.f32 %v489, 0.0
          %v510 = vmax.f32 %v492, 0.0
          %v511 = vpack.c.bf16 %v496, %v495
          %v512 = vpack.c.bf16 %v498, %v497
          %v513 = vpack.c.bf16 %v500, %v499
          %v514 = vpack.c.bf16 %v502, %v501
          %v515 = vpack.c.bf16 %v504, %v503
          %v516 = vpack.c.bf16 %v506, %v505
          %v517 = vpack.c.bf16 %v508, %v507
          %v518 = vpack.c.bf16 %v510, %v509
          %v519 = vld [vmem:[#allocation8] sm:$0xf]
          %v520 = vld [vmem:[#allocation8 + $0x4] sm:$0xf]
          %v521 = vld [vmem:[#allocation8 + $0x8] sm:$0xf]
          %v522 = vld [vmem:[#allocation8 + $0xc] sm:$0xf]
          %v523 = vld [vmem:[#allocation8 + $0x10] sm:$0xf]
          %v524 = vld [vmem:[#allocation8 + $0x14] sm:$0xf]
          %v525 = vld [vmem:[#allocation8 + $0x18] sm:$0xf]
          %v526 = vld [vmem:[#allocation8 + $0x1c] sm:$0xf]
          %v527 = vld [vmem:[#allocation8 + $0x20] sm:$0xf]
          %v528 = vld [vmem:[#allocation8 + $0x24] sm:$0xf]
          %v529 = vld [vmem:[#allocation8 + $0x28] sm:$0xf]
          %v530 = vld [vmem:[#allocation8 + $0x2c] sm:$0xf]
          %v531 = vld [vmem:[#allocation8 + $0x30] sm:$0xf]
          %v532 = vld [vmem:[#allocation8 + $0x34] sm:$0xf]
          %v533 = vld [vmem:[#allocation8 + $0x38] sm:$0xf]
          %v534 = vld [vmem:[#allocation8 + $0x3c] sm:$0xf]
          %v551 = vunpack.c.l.b16 %v519
          %v552 = vunpack.c.l.b16 %v520
          %v553 = vunpack.c.l.b16 %v521
          %v554 = vunpack.c.l.b16 %v522
          %v555 = vunpack.c.l.b16 %v523
          %v556 = vunpack.c.l.b16 %v524
          %v557 = vunpack.c.l.b16 %v525
          %v558 = vunpack.c.l.b16 %v526
          %v559 = vunpack.c.l.b16 %v527
          %v560 = vunpack.c.l.b16 %v528
          %v561 = vunpack.c.l.b16 %v529
          %v562 = vunpack.c.l.b16 %v530
          %v563 = vunpack.c.l.b16 %v531
          %v564 = vunpack.c.l.b16 %v532
          %v565 = vunpack.c.l.b16 %v533
          %v566 = vunpack.c.l.b16 %v534
          %v567 = vpack.c.b16 %v552, %v551
          %v568 = vpack.c.b16 %v554, %v553
          %v569 = vpack.c.b16 %v556, %v555
          %v570 = vpack.c.b16 %v558, %v557
          %v571 = vpack.c.b16 %v560, %v559
          %v572 = vpack.c.b16 %v562, %v561
          %v573 = vpack.c.b16 %v564, %v563
          %v574 = vpack.c.b16 %v566, %v565
          %583 = vmatprep.subr.bf16.mxu0 0
          %584 = vmatpush1.bf16.msra.mxu0 %v574
          %585 = vmatprep.subr.bf16.mxu0 0
          %586 = vmatpush1.bf16.msra.mxu0 %v573
          %587 = vmatprep.subr.bf16.mxu0 0
          %588 = vmatpush1.bf16.msra.mxu0 %v572
          %589 = vmatprep.subr.bf16.mxu0 0
          %590 = vmatpush1.bf16.msra.mxu0 %v571
          %591 = vmatprep.subr.bf16.mxu0 0
          %592 = vmatpush1.bf16.msra.mxu0 %v570
          %593 = vmatprep.subr.bf16.mxu0 0
          %594 = vmatpush1.bf16.msra.mxu0 %v569
          %595 = vmatprep.subr.bf16.mxu0 0
          %596 = vmatpush1.bf16.msra.mxu0 %v568
          %597 = vmatprep.subr.bf16.mxu0 0
          %598 = vmatpush1.bf16.msra.mxu0 %v567
          %599 = vmatprep.subr.bf16.mxu0 0
          %600 = vmatpush2.bf16.msra.mxu0 0
          %601 = vmatprep.subr.bf16.mxu0 0
          %602 = vmatpush2.bf16.msra.mxu0 0
          %603 = vmatprep.subr.bf16.mxu0 0
          %604 = vmatpush2.bf16.msra.mxu0 0
          %605 = vmatprep.subr.bf16.mxu0 0
          %606 = vmatpush2.bf16.msra.mxu0 0
          %607 = vmatprep.subr.bf16.mxu0 0
          %608 = vmatpush2.bf16.msra.mxu0 0
          %609 = vmatprep.subr.bf16.mxu0 0
          %610 = vmatpush2.bf16.msra.mxu0 0
          %611 = vmatprep.subr.bf16.mxu0 0
          %612 = vmatpush2.bf16.msra.mxu0 0
          %613 = vmatprep.subr.bf16.mxu0 0
          %614 = vmatpush2.bf16.msra.mxu0 0
          %615 = vmatprep.mubr.bf16.mxu0 0
          %616 = vmatmul.mubr.bf16.gmra.mxu0 %v511
          %v617 = vpop.f32.mrf.mxu0
          %v618 = vadd.f32 0.0, %v617
          %v619 = vpop.f32.mrf.mxu0
          %v620 = vpop.f32.mrf.mxu0
          %v621 = vadd.f32 0.0, %v620
          %v622 = vpop.f32.mrf.mxu0
          %623 = vmatprep.mubr.bf16.mxu0 0
          %624 = vmatmul.mubr.bf16.gmra.mxu0 %v512
          %v625 = vpop.f32.mrf.mxu0
          %v626 = vadd.f32 0.0, %v625
          %v627 = vpop.f32.mrf.mxu0
          %v628 = vpop.f32.mrf.mxu0
          %v629 = vadd.f32 0.0, %v628
          %v630 = vpop.f32.mrf.mxu0
          %631 = vmatprep.mubr.bf16.mxu0 0
          %632 = vmatmul.mubr.bf16.gmra.mxu0 %v513
          %v633 = vpop.f32.mrf.mxu0
          %v634 = vadd.f32 0.0, %v633
          %v635 = vpop.f32.mrf.mxu0
          %v636 = vpop.f32.mrf.mxu0
          %v637 = vadd.f32 0.0, %v636
          %v638 = vpop.f32.mrf.mxu0
          %639 = vmatprep.mubr.bf16.mxu0 0
          %640 = vmatmul.mubr.bf16.gmra.mxu0 %v514
          %v641 = vpop.f32.mrf.mxu0
          %v642 = vadd.f32 0.0, %v641
          %v643 = vpop.f32.mrf.mxu0
          %v644 = vpop.f32.mrf.mxu0
          %v645 = vadd.f32 0.0, %v644
          %v646 = vpop.f32.mrf.mxu0
          %647 = vmatprep.mubr.bf16.mxu0 0
          %648 = vmatmul.mubr.bf16.gmra.mxu0 %v515
          %v649 = vpop.f32.mrf.mxu0
          %v650 = vadd.f32 0.0, %v649
          %v651 = vpop.f32.mrf.mxu0
          %v652 = vpop.f32.mrf.mxu0
          %v653 = vadd.f32 0.0, %v652
          %v654 = vpop.f32.mrf.mxu0
          %655 = vmatprep.mubr.bf16.mxu0 0
          %656 = vmatmul.mubr.bf16.gmra.mxu0 %v516
          %v657 = vpop.f32.mrf.mxu0
          %v658 = vadd.f32 0.0, %v657
          %v659 = vpop.f32.mrf.mxu0
          %v660 = vpop.f32.mrf.mxu0
          %v661 = vadd.f32 0.0, %v660
          %v662 = vpop.f32.mrf.mxu0
          %663 = vmatprep.mubr.bf16.mxu0 0
          %664 = vmatmul.mubr.bf16.gmra.mxu0 %v517
          %v665 = vpop.f32.mrf.mxu0
          %v666 = vadd.f32 0.0, %v665
          %v667 = vpop.f32.mrf.mxu0
          %v668 = vpop.f32.mrf.mxu0
          %v669 = vadd.f32 0.0, %v668
          %v670 = vpop.f32.mrf.mxu0
          %671 = vmatprep.mubr.bf16.mxu0 0
          %672 = vmatmul.mubr.bf16.gmra.mxu0 %v518
          %v673 = vpop.f32.mrf.mxu0
          %v674 = vadd.f32 0.0, %v673
          %v675 = vpop.f32.mrf.mxu0
          %v676 = vpop.f32.mrf.mxu0
          %v677 = vadd.f32 0.0, %v676
          %v678 = vpop.f32.mrf.mxu0
          %679 = vdwg.mxu0
          %v680 = vpack.c.bf16 %v621, %v618
          %v681 = vpack.c.bf16 %v629, %v626
          %v682 = vpack.c.bf16 %v637, %v634
          %v683 = vpack.c.bf16 %v645, %v642
          %v684 = vpack.c.bf16 %v653, %v650
          %v685 = vpack.c.bf16 %v661, %v658
          %v686 = vpack.c.bf16 %v669, %v666
          %v687 = vpack.c.bf16 %v677, %v674
          %v696 = vunpack.c.l.b16 %v680
          %v697 = vunpack.c.h.b16 %v680
          %v698 = vunpack.c.l.b16 %v681
          %v699 = vunpack.c.h.b16 %v681
          %v700 = vunpack.c.l.b16 %v682
          %v701 = vunpack.c.h.b16 %v682
          %v702 = vunpack.c.l.b16 %v683
          %v703 = vunpack.c.h.b16 %v683
          %v704 = vunpack.c.l.b16 %v684
          %v705 = vunpack.c.h.b16 %v684
          %v706 = vunpack.c.l.b16 %v685
          %v707 = vunpack.c.h.b16 %v685
          %v708 = vunpack.c.l.b16 %v686
          %v709 = vunpack.c.h.b16 %v686
          %v710 = vunpack.c.l.b16 %v687
          %v711 = vunpack.c.h.b16 %v687
          %v712 = vpack.c.b16 %v696, %v696
          %v713 = vpack.c.b16 %v697, %v697
          %v714 = vpack.c.b16 %v698, %v698
          %v715 = vpack.c.b16 %v699, %v699
          %v716 = vpack.c.b16 %v700, %v700
          %v717 = vpack.c.b16 %v701, %v701
          %v718 = vpack.c.b16 %v702, %v702
          %v719 = vpack.c.b16 %v703, %v703
          %v720 = vpack.c.b16 %v704, %v704
          %v721 = vpack.c.b16 %v705, %v705
          %v722 = vpack.c.b16 %v706, %v706
          %v723 = vpack.c.b16 %v707, %v707
          %v724 = vpack.c.b16 %v708, %v708
          %v725 = vpack.c.b16 %v709, %v709
          %v726 = vpack.c.b16 %v710, %v710
          %v727 = vpack.c.b16 %v711, %v711
          %s744 = smul.addr %s255, 4
          %s745 = scalar_lea.vmem [#allocation2], %s744
          %746 = vst [vmem:[%s745] sm:$0xf] %v712
          %747 = vst [vmem:[%s745 + $0x4] sm:$0xf] %v713
          %748 = vst [vmem:[%s745 + $0x8] sm:$0xf] %v714
          %749 = vst [vmem:[%s745 + $0xc] sm:$0xf] %v715
          %750 = vst [vmem:[%s745 + $0x10] sm:$0xf] %v716
          %751 = vst [vmem:[%s745 + $0x14] sm:$0xf] %v717
          %752 = vst [vmem:[%s745 + $0x18] sm:$0xf] %v718
          %753 = vst [vmem:[%s745 + $0x1c] sm:$0xf] %v719
          %754 = vst [vmem:[%s745 + $0x20] sm:$0xf] %v720
          %755 = vst [vmem:[%s745 + $0x24] sm:$0xf] %v721
          %756 = vst [vmem:[%s745 + $0x28] sm:$0xf] %v722
          %757 = vst [vmem:[%s745 + $0x2c] sm:$0xf] %v723
          %758 = vst [vmem:[%s745 + $0x30] sm:$0xf] %v724
          %759 = vst [vmem:[%s745 + $0x34] sm:$0xf] %v725
          %760 = vst [vmem:[%s745 + $0x38] sm:$0xf] %v726
          %761 = vst [vmem:[%s745 + $0x3c] sm:$0xf] %v727
        $region56: #{tpu_custom_call.1} parent=39 // pred_fallthru
          _
        %p762 = scmp.eq.s32.totalorder %s23, 1
        // Predicated region
        $region57: #{tpu_custom_call.1} parent=39 // pred_check
          %p763 = pneg %p762
        $region58: #{tpu_custom_call.1} parent=39 // pred_check_branch
          %765 = sbr.rel (%p763) target = $region60
        $region59: #{tpu_custom_call.1} parent=39 // pred_region
          %v766 = vld [vmem:[#allocation2] sm:$0xf]
          %v767 = vld [vmem:[#allocation2 + $0x4] sm:$0xf]
          %v768 = vld [vmem:[#allocation2 + $0x8] sm:$0xf]
          %v769 = vld [vmem:[#allocation2 + $0xc] sm:$0xf]
          %v770 = vld [vmem:[#allocation2 + $0x10] sm:$0xf]
          %v771 = vld [vmem:[#allocation2 + $0x14] sm:$0xf]
          %v772 = vld [vmem:[#allocation2 + $0x18] sm:$0xf]
          %v773 = vld [vmem:[#allocation2 + $0x1c] sm:$0xf]
          %v774 = vld [vmem:[#allocation2 + $0x20] sm:$0xf]
          %v775 = vld [vmem:[#allocation2 + $0x24] sm:$0xf]
          %v776 = vld [vmem:[#allocation2 + $0x28] sm:$0xf]
          %v777 = vld [vmem:[#allocation2 + $0x2c] sm:$0xf]
          %v778 = vld [vmem:[#allocation2 + $0x30] sm:$0xf]
          %v779 = vld [vmem:[#allocation2 + $0x34] sm:$0xf]
          %v780 = vld [vmem:[#allocation2 + $0x38] sm:$0xf]
          %v781 = vld [vmem:[#allocation2 + $0x3c] sm:$0xf]
          %v782 = vld [vmem:[%s4] sm:$0x1]
          %v784 = vlaneseq
          %v785 = vshrl.u32 %v784, 7
          %v786 = vsub.s32 0, %v785
          %v787 = vrot.slane %v782, %v786
          %v805 = vunpack.c.l.b16 %v259
          %v806 = vunpack.c.l.b16 %v260
          %v807 = vunpack.c.l.b16 %v261
          %v808 = vunpack.c.l.b16 %v262
          %v809 = vunpack.c.l.b16 %v263
          %v810 = vunpack.c.l.b16 %v264
          %v811 = vunpack.c.l.b16 %v265
          %v812 = vunpack.c.l.b16 %v266
          %v813 = vunpack.c.l.b16 %v267
          %v814 = vunpack.c.l.b16 %v268
          %v815 = vunpack.c.l.b16 %v269
          %v816 = vunpack.c.l.b16 %v270
          %v817 = vunpack.c.l.b16 %v271
          %v818 = vunpack.c.l.b16 %v272
          %v819 = vunpack.c.l.b16 %v273
          %v820 = vunpack.c.l.b16 %v274
          %v821 = vpack.c.b16 %v806, %v805
          %v822 = vpack.c.b16 %v808, %v807
          %v823 = vpack.c.b16 %v810, %v809
          %v824 = vpack.c.b16 %v812, %v811
          %v825 = vpack.c.b16 %v814, %v813
          %v826 = vpack.c.b16 %v816, %v815
          %v827 = vpack.c.b16 %v818, %v817
          %v828 = vpack.c.b16 %v820, %v819
          %v853 = vunpack.c.l.b16 %v766
          %v854 = vunpack.c.l.b16 %v767
          %v855 = vunpack.c.l.b16 %v768
          %v856 = vunpack.c.l.b16 %v769
          %v857 = vunpack.c.l.b16 %v770
          %v858 = vunpack.c.l.b16 %v771
          %v859 = vunpack.c.l.b16 %v772
          %v860 = vunpack.c.l.b16 %v773
          %v861 = vunpack.c.l.b16 %v774
          %v862 = vunpack.c.l.b16 %v775
          %v863 = vunpack.c.l.b16 %v776
          %v864 = vunpack.c.l.b16 %v777
          %v865 = vunpack.c.l.b16 %v778
          %v866 = vunpack.c.l.b16 %v779
          %v867 = vunpack.c.l.b16 %v780
          %v868 = vunpack.c.l.b16 %v781
          %v869 = vpack.c.b16 %v854, %v853
          %v870 = vpack.c.b16 %v856, %v855
          %v871 = vpack.c.b16 %v858, %v857
          %v872 = vpack.c.b16 %v860, %v859
          %v873 = vpack.c.b16 %v862, %v861
          %v874 = vpack.c.b16 %v864, %v863
          %v875 = vpack.c.b16 %v866, %v865
          %v876 = vpack.c.b16 %v868, %v867
          %885 = vmatprep.subr.bf16.mxu0 0
          %886 = vmatpush1.bf16.msra.mxu0 %v876
          %887 = vmatprep.subr.bf16.mxu0 0
          %888 = vmatpush1.bf16.msra.mxu0 %v875
          %889 = vmatprep.subr.bf16.mxu0 0
          %890 = vmatpush1.bf16.msra.mxu0 %v874
          %891 = vmatprep.subr.bf16.mxu0 0
          %892 = vmatpush1.bf16.msra.mxu0 %v873
          %893 = vmatprep.subr.bf16.mxu0 0
          %894 = vmatpush1.bf16.msra.mxu0 %v872
          %895 = vmatprep.subr.bf16.mxu0 0
          %896 = vmatpush1.bf16.msra.mxu0 %v871
          %897 = vmatprep.subr.bf16.mxu0 0
          %898 = vmatpush1.bf16.msra.mxu0 %v870
          %899 = vmatprep.subr.bf16.mxu0 0
          %900 = vmatpush1.bf16.msra.mxu0 %v869
          %901 = vmatprep.subr.bf16.mxu0 0
          %902 = vmatpush2.bf16.msra.mxu0 0
          %903 = vmatprep.subr.bf16.mxu0 0
          %904 = vmatpush2.bf16.msra.mxu0 0
          %905 = vmatprep.subr.bf16.mxu0 0
          %906 = vmatpush2.bf16.msra.mxu0 0
          %907 = vmatprep.subr.bf16.mxu0 0
          %908 = vmatpush2.bf16.msra.mxu0 0
          %909 = vmatprep.subr.bf16.mxu0 0
          %910 = vmatpush2.bf16.msra.mxu0 0
          %911 = vmatprep.subr.bf16.mxu0 0
          %912 = vmatpush2.bf16.msra.mxu0 0
          %913 = vmatprep.subr.bf16.mxu0 0
          %914 = vmatpush2.bf16.msra.mxu0 0
          %915 = vmatprep.subr.bf16.mxu0 0
          %916 = vmatpush2.bf16.msra.mxu0 0
          %917 = vmatprep.mubr.bf16.mxu0 0
          %918 = vmatmul.mubr.bf16.gmra.mxu0 %v821
          %v919 = vpop.f32.mrf.mxu0
          %v920 = vadd.f32 %v787, %v919
          %v921 = vpop.f32.mrf.mxu0
          %v922 = vpop.f32.mrf.mxu0
          %v923 = vadd.f32 %v787, %v922
          %v924 = vpop.f32.mrf.mxu0
          %925 = vmatprep.mubr.bf16.mxu0 0
          %926 = vmatmul.mubr.bf16.gmra.mxu0 %v822
          %v927 = vpop.f32.mrf.mxu0
          %v928 = vadd.f32 %v787, %v927
          %v929 = vpop.f32.mrf.mxu0
          %v930 = vpop.f32.mrf.mxu0
          %v931 = vadd.f32 %v787, %v930
          %v932 = vpop.f32.mrf.mxu0
          %933 = vmatprep.mubr.bf16.mxu0 0
          %934 = vmatmul.mubr.bf16.gmra.mxu0 %v823
          %v935 = vpop.f32.mrf.mxu0
          %v936 = vadd.f32 %v787, %v935
          %v937 = vpop.f32.mrf.mxu0
          %v938 = vpop.f32.mrf.mxu0
          %v939 = vadd.f32 %v787, %v938
          %v940 = vpop.f32.mrf.mxu0
          %941 = vmatprep.mubr.bf16.mxu0 0
          %942 = vmatmul.mubr.bf16.gmra.mxu0 %v824
          %v943 = vpop.f32.mrf.mxu0
          %v944 = vadd.f32 %v787, %v943
          %v945 = vpop.f32.mrf.mxu0
          %v946 = vpop.f32.mrf.mxu0
          %v947 = vadd.f32 %v787, %v946
          %v948 = vpop.f32.mrf.mxu0
          %949 = vmatprep.mubr.bf16.mxu0 0
          %950 = vmatmul.mubr.bf16.gmra.mxu0 %v825
          %v951 = vpop.f32.mrf.mxu0
          %v952 = vadd.f32 %v787, %v951
          %v953 = vpop.f32.mrf.mxu0
          %v954 = vpop.f32.mrf.mxu0
          %v955 = vadd.f32 %v787, %v954
          %v956 = vpop.f32.mrf.mxu0
          %957 = vmatprep.mubr.bf16.mxu0 0
          %958 = vmatmul.mubr.bf16.gmra.mxu0 %v826
          %v959 = vpop.f32.mrf.mxu0
          %v960 = vadd.f32 %v787, %v959
          %v961 = vpop.f32.mrf.mxu0
          %v962 = vpop.f32.mrf.mxu0
          %v963 = vadd.f32 %v787, %v962
          %v964 = vpop.f32.mrf.mxu0
          %965 = vmatprep.mubr.bf16.mxu0 0
          %966 = vmatmul.mubr.bf16.gmra.mxu0 %v827
          %v967 = vpop.f32.mrf.mxu0
          %v968 = vadd.f32 %v787, %v967
          %v969 = vpop.f32.mrf.mxu0
          %v970 = vpop.f32.mrf.mxu0
          %v971 = vadd.f32 %v787, %v970
          %v972 = vpop.f32.mrf.mxu0
          %973 = vmatprep.mubr.bf16.mxu0 0
          %974 = vmatmul.mubr.bf16.gmra.mxu0 %v828
          %v975 = vpop.f32.mrf.mxu0
          %v976 = vadd.f32 %v787, %v975
          %v977 = vpop.f32.mrf.mxu0
          %v978 = vpop.f32.mrf.mxu0
          %v979 = vadd.f32 %v787, %v978
          %v980 = vpop.f32.mrf.mxu0
          %981 = vdwg.mxu0
          %982 = vst [vmem:[#allocation9] sm:$0xff] %v920
          %983 = vst [vmem:[#allocation9 + $0x8] sm:$0xff] %v923
          %984 = vst [vmem:[#allocation9 + $0x10] sm:$0xff] %v928
          %985 = vst [vmem:[#allocation9 + $0x18] sm:$0xff] %v931
          %986 = vst [vmem:[#allocation9 + $0x20] sm:$0xff] %v936
          %987 = vst [vmem:[#allocation9 + $0x28] sm:$0xff] %v939
          %988 = vst [vmem:[#allocation9 + $0x30] sm:$0xff] %v944
          %989 = vst [vmem:[#allocation9 + $0x38] sm:$0xff] %v947
          %990 = vst [vmem:[#allocation9 + $0x40] sm:$0xff] %v952
          %991 = vst [vmem:[#allocation9 + $0x48] sm:$0xff] %v955
          %992 = vst [vmem:[#allocation9 + $0x50] sm:$0xff] %v960
          %993 = vst [vmem:[#allocation9 + $0x58] sm:$0xff] %v963
          %994 = vst [vmem:[#allocation9 + $0x60] sm:$0xff] %v968
          %995 = vst [vmem:[#allocation9 + $0x68] sm:$0xff] %v971
          %996 = vst [vmem:[#allocation9 + $0x70] sm:$0xff] %v976
          %997 = vst [vmem:[#allocation9 + $0x78] sm:$0xff] %v979
        $region60: #{tpu_custom_call.1} parent=39 // pred_fallthru
          _
        // Predicated region
        $region61: #{tpu_custom_call.1} parent=39 // pred_check
          %p998 = pneg %p154
        $region62: #{tpu_custom_call.1} parent=39 // pred_check_branch
          %1000 = sbr.rel (%p998) target = $region64
        $region63: #{tpu_custom_call.1} parent=39 // pred_region
          %s1001 = smul.u32 16, %s24
          %s1003 = ssub.s32 2048, 2048
          %1004 = vsyncadd [#allocation5], %s1003
          %s1005 = smul.addr %s1001, 128
          %s1006 = scalar_lea.hbm %s5, %s1005
          %s1007 = sshll.u32 [#allocation9], 4
          %s1008 = int_to_ptr.vmem [resolvable:$true] %s1007
          %1013 = dma.vmem_to_hbm [thread:$0]  %s1008, 2048, %s1006, [#allocation5], 128, 128, 8
        $region64: #{tpu_custom_call.1} parent=39 // pred_fallthru
          _
        // Predicated region
        $region65: #{tpu_custom_call.1} parent=39 // pred_check
          %p1014 = pneg %p154
        $region66: #{tpu_custom_call.1} parent=39 // pred_check_branch
          %1016 = sbr.rel (%p1014) target = $region68
        $region67: #{tpu_custom_call.1} parent=39 // pred_region
          %1017 = dma.done [#allocation5], 2048
        $region68: #{tpu_custom_call.1} parent=39 // pred_fallthru
          _
      $region40: #{tpu_custom_call.1} parent=5 // pred_fallthru
        _
      %p1018 = scmp.le.s32.totalorder 2, %s14
      // Predicated region
      $region69: #{tpu_custom_call.1} parent=5 // pred_check
        %p1019 = pneg %p1018
      $region70: #{tpu_custom_call.1} parent=5 // pred_check_branch
        %1021 = sbr.rel (%p1019) target = $region72
      $region71: #{tpu_custom_call.1} parent=5 // pred_region
        %s1022 = ssub.s32 %s14, 2
      $region72: #{tpu_custom_call.1} parent=5 // pred_fallthru
        _
    $region6: #{tpu_custom_call.1} parent=1 // loop_footer
      %s18 = sadd.s32 1, %s14
    $region7: #{tpu_custom_call.1} parent=1 // loop_footer_branch
      %13 = sbr.rel target = $region3
    $region8: #{tpu_custom_call.1} parent=1 // loop_exit
      _
    %1023 = vsyncpa [#allocation4], 1
    %s1024 = scalar_lea.sflag [#allocation4], 1
    %1025 = vsyncpa %s1024, 1
    %1026 = vsyncpa [#allocation7], 1
    %1027 = vsyncpa [#allocation5], 1
    %s1028 = scalar_lea.sflag [#allocation5], 1
    %1029 = vsyncpa %s1028, 1

</llo_original>
